<compile_context>
chip_gen: v7x
topology: tpu7x:2x2x1
jax: 0.10.0
libtpu: 0.0.40
codegen_flags: <defaults>
</compile_context>

<pallas_src>
import functools

import jax
import jax.numpy as jnp
import numpy as np
from jax.experimental import pallas as pl
from jax.experimental.pallas import tpu as pltpu

LEAKY_SLOPE = 0.2  # spacegraph get_activation_function('leakyrelu') uses slope 0.2


def _round_up(x, m):
    return ((x + m - 1) // m) * m


def _intersect_attn_kernel(wq_ref, wke_ref, wks_ref, q_ref, ke_ref, ks_ref, o_ref,
                           *, num_attn, num_ctx, dk):
    """Per batch-block body (batch on the 128-lane minor axis everywhere).

    wq_ref : [K*N, Dq]     query part of atten_vecs  (row k*N+n = atten_vecs[:Dq, k])
    wke_ref: [K*N, N*Dk]   block-diagonal key part
    wks_ref: [K*N, N*Ds]   block-diagonal spatial part
    q_ref  : [Dq,   bb]    query_embed^T              (streamed)
    ke_ref : [N*Dk, bb]    key_embeds    transposed   (streamed)
    ks_ref : [N*Ds, bb]    key_spa       transposed   (streamed)
    o_ref  : [Dk,   bb]    sigmoid(combined)^T        (f32, lane-dense store)
    """
    K, N = num_attn, num_ctx
    bb = q_ref.shape[-1]

    # Fused logits for all heads & context points: [K*N, bb].  Three MXU dots (one per
    # input slab) accumulated in f32; batch stays on lanes so everything downstream is
    # lane-dense instead of 4/128-utilized.
    logits = jnp.dot(wq_ref[...], q_ref[...], preferred_element_type=jnp.float32)
    logits += jnp.dot(wke_ref[...], ke_ref[...], preferred_element_type=jnp.float32)
    logits += jnp.dot(wks_ref[...], ks_ref[...], preferred_element_type=jnp.float32)

    # LeakyReLU + per-head softmax over the context axis N, vectorized over all K heads.
    g = logits.reshape(K, N, bb)                       # sublane split; N*K rows -> K pages
    g = jnp.where(g >= 0, g, LEAKY_SLOPE * g)
    m = jnp.max(g, axis=1, keepdims=True)              # [K, 1, bb]
    e = jnp.exp(g - m)
    s = jnp.sum(e, axis=1, keepdims=True)              # [K, 1, bb]
    attn = e * pl.reciprocal(s, approx=True)           # EUP reciprocal (free slot)
    wsum = jnp.sum(attn, axis=0)                       # [N, bb] = sum_k attn[b, n, k]

    # combined[d, b] = sum_n wsum[n, b] * key_embeds[b, n, d]; key rows are re-sliced out
    # of the already-resident ke slab (no second HBM read).  f32 accumulate (v5e VPU has
    # no bf16 arithmetic).
    acc = jnp.zeros((dk, bb), jnp.float32)
    for n in range(N):                                  # N small & static -> unrolled
        ke_n = ke_ref[pl.ds(n * dk, dk), :].astype(jnp.float32)   # [Dk, bb], aligned slice
        acc = acc + wsum[n:n + 1, :] * ke_n

    o_ref[...] = jax.nn.sigmoid(acc * (1.0 / K)).astype(o_ref.dtype)

    # TODO(synk): layernorm / post_linear+dropout branches (layernorm=True,
    # use_post_mat=True) and the have_query_embed=False / empty key_spa_embeds paths are
    # off in the default config and not implemented here.


@functools.partial(jax.jit, static_argnames=("num_attn", "block_b", "stream_dtype"))
def intersect_concat_attention(key_embeds, key_spa_embeds, query_embed, atten_vecs,
                               num_attn, block_b=None, stream_dtype=jnp.bfloat16):
    B, N, Dk = key_embeds.shape
    Ds = key_spa_embeds.shape[-1]
    Dq = query_embed.shape[-1]
    K = num_attn
    KN = K * N
    assert atten_vecs.shape == (Dq + Dk + Ds, K)
    assert Dq == Dk, "module asserts key_dim == query_dim when have_query_embed=True"
    assert Dk % 8 == 0, "Dk must be sublane-aligned for the static ke slices in the kernel"

    if block_b is None:
        # Lane-dense batch blocks.  Double-buffered streamed tiles stay far below every
        # generation's scoped-VMEM default (16 MiB on v5e); only bump
        # CompilerParams(vmem_limit_bytes=...) if block_b is ever raised past ~1800.
        in_bytes_per_col = jnp.dtype(stream_dtype).itemsize * (Dq + N * (Dk + Ds))
        budget = 8 * 1024 * 1024
        cap = max(128, (budget // (2 * in_bytes_per_col)) // 128 * 128)
        # Target >= 4 grid steps when the batch allows it so ("parallel",) gives v7x's two
        # TensorCores work to split; no effect on v5e/v6e (single TC).
        want = _round_up(max(1, -(-B // 4)), 128)
        block_b = max(128, min(1024, cap, want))
    assert block_b % 128 == 0

    f32 = jnp.float32
    sd = stream_dtype

    # ---- streamed operands: one cast + one transpose each (batch -> lane axis). ----
    # ---- No concat, no pad; ragged edge blocks are masked by Pallas.            ----
    q_t = query_embed.astype(sd).T                                                # [Dq, B]
    ke_t = jnp.transpose(key_embeds.astype(sd), (1, 2, 0)).reshape(N * Dk, B)     # [N*Dk, B]
    ks_t = jnp.transpose(key_spa_embeds.astype(sd), (1, 2, 0)).reshape(N * Ds, B) # [N*Ds, B]

    # ---- tiny VMEM-resident weights, column-matched to the three slabs ----
    # w_q [k*N+n, :]            = atten_vecs[:Dq, k]
    # w_ke[k*N+n, m*Dk+d]       = atten_vecs[Dq+d, k]      * (n == m)
    # w_ks[k*N+n, m*Ds+d]       = atten_vecs[Dq+Dk+d, k]   * (n == m)
    av = atten_vecs.astype(f32)
    av_q, av_k, av_s = av[:Dq], av[Dq:Dq + Dk], av[Dq + Dk:]
    w_q = jnp.broadcast_to(av_q.T[:, None, :], (K, N, Dq)).reshape(KN, Dq)
    eye = jnp.eye(N, dtype=f32)
    w_ke = jnp.einsum('dk,nm->knmd', av_k, eye).reshape(KN, N * Dk)
    w_ks = jnp.einsum('dk,nm->knmd', av_s, eye).reshape(KN, N * Ds)
    w_q, w_ke, w_ks = w_q.astype(sd), w_ke.astype(sd), w_ks.astype(sd)

    kernel = functools.partial(_intersect_attn_kernel, num_attn=K, num_ctx=N, dk=Dk)

    out_t = pl.pallas_call(
        kernel,
        out_shape=jax.ShapeDtypeStruct((Dk, B), f32),
        grid=(pl.cdiv(B, block_b),),
        in_specs=[
            pl.BlockSpec((KN, Dq), lambda i: (0, 0)),           # resident weights
            pl.BlockSpec((KN, N * Dk), lambda i: (0, 0)),
            pl.BlockSpec((KN, N * Ds), lambda i: (0, 0)),
            pl.BlockSpec((Dq, block_b), lambda i: (0, i)),      # streamed, lane-dense
            pl.BlockSpec((N * Dk, block_b), lambda i: (0, i)),
            pl.BlockSpec((N * Ds, block_b), lambda i: (0, i)),
        ],
        out_specs=pl.BlockSpec((Dk, block_b), lambda i: (0, i)),
        compiler_params=pltpu.CompilerParams(dimension_semantics=("parallel",)),
    )(w_q, w_ke, w_ks, q_t, ke_t, ks_t)

    return out_t.T.astype(key_embeds.dtype)                                       # [B, Dk]


def _reference(key_embeds, key_spa_embeds, query_embed, atten_vecs, num_attn):
    B, N, _ = key_embeds.shape
    q_exp = jnp.broadcast_to(query_embed[:, None, :], (B, N, query_embed.shape[-1]))
    concat = jnp.concatenate([q_exp, key_embeds, key_spa_embeds], axis=2)
    attn = jnp.einsum("bnd,dk->bnk", concat, atten_vecs)
    attn = jnp.where(attn >= 0, attn, LEAKY_SLOPE * attn)
    attn = jax.nn.softmax(attn, axis=1)
    attn_t = jnp.swapaxes(attn, 1, 2)                        # [B, K, N]
    combined = jnp.einsum("bkn,bnd->bkd", attn_t, key_embeds)
    combined = jnp.sum(combined, axis=1) * (1.0 / num_attn)
    return jax.nn.sigmoid(combined)


def _make_inputs(seed, B, N, Dq, Dk, Ds, K):
    k1, k2, k3, k4 = jax.random.split(jax.random.PRNGKey(seed), 4)
    key_embeds = jax.random.normal(k1, (B, N, Dk), dtype=jnp.float32)
    key_spa_embeds = jax.random.normal(k2, (B, N, Ds), dtype=jnp.float32)
    query_embed = jax.random.normal(k3, (B, Dq), dtype=jnp.float32)
    D_total = Dq + Dk + Ds
    bound = float(np.sqrt(6.0 / (D_total + K)))               # xavier_uniform_ range
    atten_vecs = jax.random.uniform(k4, (D_total, K), dtype=jnp.float32,
                                    minval=-bound, maxval=bound)
    return key_embeds, key_spa_embeds, query_embed, atten_vecs


if __name__ == "__main__":
    # Small shapes consistent with the module's forward.
    B, N = 2, 8                  # batch_size, num_context_pt
    Dq = Dk = 32                 # query_dim == key_dim (asserted by the module)
    Ds = 32                      # spa_embed_dim
    K = 4                        # num_attn

    ke, ks, q, av = _make_inputs(0, B, N, Dq, Dk, Ds, K)
    # f32 streaming path: validates kernel structure tightly (approx-reciprocal softmax
    # normalization contributes only ~2^-12 relative error).
    out = intersect_concat_attention(ke, ks, q, av, num_attn=K, stream_dtype=jnp.float32)
    out = jax.block_until_ready(out)
    ref = _reference(ke, ks, q, av, num_attn=K)
    np.testing.assert_allclose(np.asarray(out), np.asarray(ref), rtol=1e-3, atol=1e-3)

    # Default bf16 streaming path; multi-step grid with a ragged edge block (300 = 2*128+44)
    # exercises the masked DMA / masked store path and the megacore block split.
    B2 = 300
    ke2, ks2, q2, av2 = _make_inputs(1, B2, N, Dq, Dk, Ds, K)
    out2 = intersect_concat_attention(ke2, ks2, q2, av2, num_attn=K)
    out2 = jax.block_until_ready(out2)
    ref2 = _reference(ke2, ks2, q2, av2, num_attn=K)
    np.testing.assert_allclose(np.asarray(out2), np.asarray(ref2), rtol=2e-2, atol=2e-2)

    print("KERNEL_OK")
</pallas_src>

<mosaic_0001>
module attributes {stable_mosaic.version = 11 : i64} {
  func.func @_intersect_attn_kernel(%arg0: i32, %arg1: memref<32x32xf32, #tpu.memory_space<vmem>>, %arg2: memref<32x256xf32, #tpu.memory_space<vmem>>, %arg3: memref<32x256xf32, #tpu.memory_space<vmem>>, %arg4: memref<32x128xf32, #tpu.memory_space<vmem>>, %arg5: memref<256x128xf32, #tpu.memory_space<vmem>>, %arg6: memref<256x128xf32, #tpu.memory_space<vmem>>, %arg7: memref<32x128xf32, #tpu.memory_space<vmem>>) attributes {dimension_semantics = [#tpu.dimension_semantics<parallel>], iteration_bounds = array<i64: 1>, scalar_prefetch = 0 : i64, scratch_operands = 0 : i64, tpu.core_type = #tpu.core_type<tc>, window_params = [{pipeline_mode = #tpu.pipeline_mode<synchronous>, transform_indices = @transform_0, window_bounds = array<i64: 32, 32>}, {pipeline_mode = #tpu.pipeline_mode<synchronous>, transform_indices = @transform_1, window_bounds = array<i64: 32, 256>}, {pipeline_mode = #tpu.pipeline_mode<synchronous>, transform_indices = @transform_2, window_bounds = array<i64: 32, 256>}, {transform_indices = @transform_3, window_bounds = array<i64: 32, 128>}, {transform_indices = @transform_4, window_bounds = array<i64: 256, 128>}, {transform_indices = @transform_5, window_bounds = array<i64: 256, 128>}, {transform_indices = @transform_6, window_bounds = array<i64: 32, 128>}]} {
    %c0 = arith.constant 0 : index
    %c0_0 = arith.constant 0 : index
    %0 = vector.load %arg1[%c0, %c0_0] : memref<32x32xf32, #tpu.memory_space<vmem>>, vector<32x32xf32>
    %c0_1 = arith.constant 0 : index
    %c0_2 = arith.constant 0 : index
    %1 = vector.load %arg4[%c0_1, %c0_2] : memref<32x128xf32, #tpu.memory_space<vmem>>, vector<32x128xf32>
    %cst = arith.constant dense<0.000000e+00> : vector<32x128xf32>
    %2 = tpu.matmul %0, %1, %cst {dimension_numbers = #tpu.dot_dimension_numbers<[1], [0], [0], [1], [0, 0, 1, 1], [], []>} : vector<32x32xf32>, vector<32x128xf32>, vector<32x128xf32> -> vector<32x128xf32>
    %c0_3 = arith.constant 0 : index
    %c0_4 = arith.constant 0 : index
    %3 = vector.load %arg2[%c0_3, %c0_4] : memref<32x256xf32, #tpu.memory_space<vmem>>, vector<32x256xf32>
    %c0_5 = arith.constant 0 : index
    %c0_6 = arith.constant 0 : index
    %4 = vector.load %arg5[%c0_5, %c0_6] : memref<256x128xf32, #tpu.memory_space<vmem>>, vector<256x128xf32>
    %cst_7 = arith.constant dense<0.000000e+00> : vector<32x128xf32>
    %5 = tpu.matmul %3, %4, %cst_7 {dimension_numbers = #tpu.dot_dimension_numbers<[1], [0], [0], [1], [0, 0, 1, 1], [], []>} : vector<32x256xf32>, vector<256x128xf32>, vector<32x128xf32> -> vector<32x128xf32>
    %6 = arith.addf %2, %5 : vector<32x128xf32>
    %c0_8 = arith.constant 0 : index
    %c0_9 = arith.constant 0 : index
    %7 = vector.load %arg3[%c0_8, %c0_9] : memref<32x256xf32, #tpu.memory_space<vmem>>, vector<32x256xf32>
    %c0_10 = arith.constant 0 : index
    %c0_11 = arith.constant 0 : index
    %8 = vector.load %arg6[%c0_10, %c0_11] : memref<256x128xf32, #tpu.memory_space<vmem>>, vector<256x128xf32>
    %cst_12 = arith.constant dense<0.000000e+00> : vector<32x128xf32>
    %9 = tpu.matmul %7, %8, %cst_12 {dimension_numbers = #tpu.dot_dimension_numbers<[1], [0], [0], [1], [0, 0, 1, 1], [], []>} : vector<32x256xf32>, vector<256x128xf32>, vector<32x128xf32> -> vector<32x128xf32>
    %10 = arith.addf %6, %9 : vector<32x128xf32>
    %11 = vector.shape_cast %10 : vector<32x128xf32> to vector<4x8x128xf32>
    %cst_13 = arith.constant 0.000000e+00 : f32
    %12 = vector.broadcast %cst_13 : f32 to vector<4x8x128xf32>
    %13 = arith.cmpf oge, %11, %12 : vector<4x8x128xf32>
    %cst_14 = arith.constant 2.000000e-01 : f32
    %14 = vector.broadcast %cst_14 : f32 to vector<4x8x128xf32>
    %15 = arith.mulf %14, %11 : vector<4x8x128xf32>
    %16 = arith.select %13, %11, %15 : vector<4x8x128xi1>, vector<4x8x128xf32>
    %cst_15 = arith.constant dense<0xFF800000> : vector<4x128xf32>
    %17 = vector.multi_reduction <maximumf>, %16, %cst_15 [1] : vector<4x8x128xf32> to vector<4x128xf32>
    %18 = vector.shape_cast %17 : vector<4x128xf32> to vector<4x1x128xf32>
    %19 = vector.broadcast %18 : vector<4x1x128xf32> to vector<4x8x128xf32>
    %20 = arith.subf %16, %19 : vector<4x8x128xf32>
    %21 = math.exp %20 : vector<4x8x128xf32>
    %cst_16 = arith.constant dense<0.000000e+00> : vector<4x128xf32>
    %22 = vector.multi_reduction <add>, %21, %cst_16 [1] : vector<4x8x128xf32> to vector<4x128xf32>
    %23 = vector.shape_cast %22 : vector<4x128xf32> to vector<4x1x128xf32>
    %24 = tpu.reciprocal %23 {approx = true} : vector<4x1x128xf32> -> vector<4x1x128xf32>
    %25 = vector.broadcast %24 : vector<4x1x128xf32> to vector<4x8x128xf32>
    %26 = arith.mulf %21, %25 : vector<4x8x128xf32>
    %cst_17 = arith.constant dense<0.000000e+00> : vector<8x128xf32>
    %27 = vector.multi_reduction <add>, %26, %cst_17 [0] : vector<4x8x128xf32> to vector<8x128xf32>
    %cst_18 = arith.constant 0.000000e+00 : f32
    %28 = vector.broadcast %cst_18 : f32 to vector<32x128xf32>
    %c0_19 = arith.constant 0 : index
    %c0_20 = arith.constant 0 : index
    %29 = vector.load %arg5[%c0_19, %c0_20] : memref<256x128xf32, #tpu.memory_space<vmem>>, vector<32x128xf32>
    %30 = vector.extract_strided_slice %27 {offsets = [0, 0], sizes = [1, 128], strides = [1, 1]} : vector<8x128xf32> to vector<1x128xf32>
    %31 = vector.broadcast %30 : vector<1x128xf32> to vector<32x128xf32>
    %32 = arith.mulf %31, %29 : vector<32x128xf32>
    %33 = arith.addf %28, %32 : vector<32x128xf32>
    %c32 = arith.constant 32 : index
    %c0_21 = arith.constant 0 : index
    %34 = vector.load %arg5[%c32, %c0_21] : memref<256x128xf32, #tpu.memory_space<vmem>>, vector<32x128xf32>
    %35 = vector.extract_strided_slice %27 {offsets = [1, 0], sizes = [1, 128], strides = [1, 1]} : vector<8x128xf32> to vector<1x128xf32>
    %36 = vector.broadcast %35 : vector<1x128xf32> to vector<32x128xf32>
    %37 = arith.mulf %36, %34 : vector<32x128xf32>
    %38 = arith.addf %33, %37 : vector<32x128xf32>
    %c64 = arith.constant 64 : index
    %c0_22 = arith.constant 0 : index
    %39 = vector.load %arg5[%c64, %c0_22] : memref<256x128xf32, #tpu.memory_space<vmem>>, vector<32x128xf32>
    %40 = vector.extract_strided_slice %27 {offsets = [2, 0], sizes = [1, 128], strides = [1, 1]} : vector<8x128xf32> to vector<1x128xf32>
    %41 = vector.broadcast %40 : vector<1x128xf32> to vector<32x128xf32>
    %42 = arith.mulf %41, %39 : vector<32x128xf32>
    %43 = arith.addf %38, %42 : vector<32x128xf32>
    %c96 = arith.constant 96 : index
    %c0_23 = arith.constant 0 : index
    %44 = vector.load %arg5[%c96, %c0_23] : memref<256x128xf32, #tpu.memory_space<vmem>>, vector<32x128xf32>
    %45 = vector.extract_strided_slice %27 {offsets = [3, 0], sizes = [1, 128], strides = [1, 1]} : vector<8x128xf32> to vector<1x128xf32>
    %46 = vector.broadcast %45 : vector<1x128xf32> to vector<32x128xf32>
    %47 = arith.mulf %46, %44 : vector<32x128xf32>
    %48 = arith.addf %43, %47 : vector<32x128xf32>
    %c128 = arith.constant 128 : index
    %c0_24 = arith.constant 0 : index
    %49 = vector.load %arg5[%c128, %c0_24] : memref<256x128xf32, #tpu.memory_space<vmem>>, vector<32x128xf32>
    %50 = vector.extract_strided_slice %27 {offsets = [4, 0], sizes = [1, 128], strides = [1, 1]} : vector<8x128xf32> to vector<1x128xf32>
    %51 = vector.broadcast %50 : vector<1x128xf32> to vector<32x128xf32>
    %52 = arith.mulf %51, %49 : vector<32x128xf32>
    %53 = arith.addf %48, %52 : vector<32x128xf32>
    %c160 = arith.constant 160 : index
    %c0_25 = arith.constant 0 : index
    %54 = vector.load %arg5[%c160, %c0_25] : memref<256x128xf32, #tpu.memory_space<vmem>>, vector<32x128xf32>
    %55 = vector.extract_strided_slice %27 {offsets = [5, 0], sizes = [1, 128], strides = [1, 1]} : vector<8x128xf32> to vector<1x128xf32>
    %56 = vector.broadcast %55 : vector<1x128xf32> to vector<32x128xf32>
    %57 = arith.mulf %56, %54 : vector<32x128xf32>
    %58 = arith.addf %53, %57 : vector<32x128xf32>
    %c192 = arith.constant 192 : index
    %c0_26 = arith.constant 0 : index
    %59 = vector.load %arg5[%c192, %c0_26] : memref<256x128xf32, #tpu.memory_space<vmem>>, vector<32x128xf32>
    %60 = vector.extract_strided_slice %27 {offsets = [6, 0], sizes = [1, 128], strides = [1, 1]} : vector<8x128xf32> to vector<1x128xf32>
    %61 = vector.broadcast %60 : vector<1x128xf32> to vector<32x128xf32>
    %62 = arith.mulf %61, %59 : vector<32x128xf32>
    %63 = arith.addf %58, %62 : vector<32x128xf32>
    %c224 = arith.constant 224 : index
    %c0_27 = arith.constant 0 : index
    %64 = vector.load %arg5[%c224, %c0_27] : memref<256x128xf32, #tpu.memory_space<vmem>>, vector<32x128xf32>
    %65 = vector.extract_strided_slice %27 {offsets = [7, 0], sizes = [1, 128], strides = [1, 1]} : vector<8x128xf32> to vector<1x128xf32>
    %66 = vector.broadcast %65 : vector<1x128xf32> to vector<32x128xf32>
    %67 = arith.mulf %66, %64 : vector<32x128xf32>
    %68 = arith.addf %63, %67 : vector<32x128xf32>
    %cst_28 = arith.constant 2.500000e-01 : f32
    %69 = vector.broadcast %cst_28 : f32 to vector<32x128xf32>
    %70 = arith.mulf %68, %69 : vector<32x128xf32>
    %71 = arith.negf %70 : vector<32x128xf32>
    %72 = math.exp %71 : vector<32x128xf32>
    %cst_29 = arith.constant 1.000000e+00 : f32
    %73 = vector.broadcast %cst_29 : f32 to vector<32x128xf32>
    %74 = arith.addf %73, %72 : vector<32x128xf32>
    %75 = arith.divf %73, %74 : vector<32x128xf32>
    %c0_30 = arith.constant 0 : index
    %c0_31 = arith.constant 0 : index
    %76 = vector.load %arg7[%c0_30, %c0_31] : memref<32x128xf32, #tpu.memory_space<vmem>>, vector<32x128xf32>
    tpu.vector_store %arg7[%c0_30, %c0_31], %75 {strides = array<i32>} : memref<32x128xf32, #tpu.memory_space<vmem>>, vector<32x128xf32>,
    return
  }
  func.func @transform_0(%arg0: i32) -> (i32, i32) {
    %c0_i32 = arith.constant 0 : i32
    %c0_i32_0 = arith.constant 0 : i32
    %c0_i32_1 = arith.constant 0 : i32
    return %c0_i32, %c0_i32_0 : i32, i32
  }
  func.func @transform_1(%arg0: i32) -> (i32, i32) {
    %c0_i32 = arith.constant 0 : i32
    %c0_i32_0 = arith.constant 0 : i32
    %c0_i32_1 = arith.constant 0 : i32
    return %c0_i32, %c0_i32_0 : i32, i32
  }
  func.func @transform_2(%arg0: i32) -> (i32, i32) {
    %c0_i32 = arith.constant 0 : i32
    %c0_i32_0 = arith.constant 0 : i32
    %c0_i32_1 = arith.constant 0 : i32
    return %c0_i32, %c0_i32_0 : i32, i32
  }
  func.func @transform_3(%arg0: i32) -> (i32, i32) {
    %c0_i32 = arith.constant 0 : i32
    %c0_i32_0 = arith.constant 0 : i32
    return %c0_i32, %arg0 : i32, i32
  }
  func.func @transform_4(%arg0: i32) -> (i32, i32) {
    %c0_i32 = arith.constant 0 : i32
    %c0_i32_0 = arith.constant 0 : i32
    return %c0_i32, %arg0 : i32, i32
  }
  func.func @transform_5(%arg0: i32) -> (i32, i32) {
    %c0_i32 = arith.constant 0 : i32
    %c0_i32_0 = arith.constant 0 : i32
    return %c0_i32, %arg0 : i32, i32
  }
  func.func @transform_6(%arg0: i32) -> (i32, i32) {
    %c0_i32 = arith.constant 0 : i32
    %c0_i32_0 = arith.constant 0 : i32
    return %c0_i32, %arg0 : i32, i32
  }
}

</mosaic_0001>

<llo_original>
// kernel: intersect_concat_attention.1
$region0: #{intersect_concat_attention.1}
  #allocation0 [shape = 'u32[]', space=smem, size = 0x4, offset = 0x4, fixed_abs, tag = 'smem constant byte address 0x4 - core index']
  #allocation1 [shape = 'u32[144,128]{1,0:T(1,128)}', space=vmem, size = 0x12000, scoped, tag = 'internal scratch']
  %s0 = inlined_call_operand.vmem [shape: f32[32,32], index: 0, kind: input, shape index: {}]
  %s1 = inlined_call_operand.vmem [shape: f32[32,256], index: 1, kind: input, shape index: {}]
  %s2 = inlined_call_operand.vmem [shape: f32[32,256], index: 2, kind: input, shape index: {}]
  %s3 = inlined_call_operand.vmem [shape: f32[32,2], index: 3, kind: input, shape index: {}]
  %s4 = inlined_call_operand.vmem [shape: f32[256,2], index: 4, kind: input, shape index: {}]
  %s5 = inlined_call_operand.vmem [shape: f32[256,2], index: 5, kind: input, shape index: {}]
  %s6 = inlined_call_operand.vmem [shape: f32[32,2], index: 6, kind: output, shape index: {}]
  %s7 = sld [smem:[#allocation0]]
  $region34: #{intersect_concat_attention.1} parent=0
    _
  %s9 = ssub.s32 1, %s7
  %s10 = scalar_select 0, %s9, %s7
  // Predicated region
  $region2: #{intersect_concat_attention.1} parent=0 // pred_check
    _
  $region3: #{intersect_concat_attention.1} parent=0 // pred_check_branch
    %12 = sbr.rel (0) target = $region5
  $region4: #{intersect_concat_attention.1} parent=0 // pred_region
    _
  $region5: #{intersect_concat_attention.1} parent=0 // pred_fallthru
    _
  // Predicated region
  $region6: #{intersect_concat_attention.1} parent=0 // pred_check
    _
  $region7: #{intersect_concat_attention.1} parent=0 // pred_check_branch
    %14 = sbr.rel (0) target = $region9
  $region8: #{intersect_concat_attention.1} parent=0 // pred_region
    _
  $region9: #{intersect_concat_attention.1} parent=0 // pred_fallthru
    _
  // Predicated region
  $region10: #{intersect_concat_attention.1} parent=0 // pred_check
    _
  $region11: #{intersect_concat_attention.1} parent=0 // pred_check_branch
    %16 = sbr.rel (0) target = $region13
  $region12: #{intersect_concat_attention.1} parent=0 // pred_region
    _
  $region13: #{intersect_concat_attention.1} parent=0 // pred_fallthru
    _
  // Predicated region
  $region14: #{intersect_concat_attention.1} parent=0 // pred_check
    _
  $region15: #{intersect_concat_attention.1} parent=0 // pred_check_branch
    %18 = sbr.rel (0) target = $region17
  $region16: #{intersect_concat_attention.1} parent=0 // pred_region
    _
  $region17: #{intersect_concat_attention.1} parent=0 // pred_fallthru
    _
  // Predicated region
  $region18: #{intersect_concat_attention.1} parent=0 // pred_check
    _
  $region19: #{intersect_concat_attention.1} parent=0 // pred_check_branch
    %20 = sbr.rel (0) target = $region21
  $region20: #{intersect_concat_attention.1} parent=0 // pred_region
    _
  $region21: #{intersect_concat_attention.1} parent=0 // pred_fallthru
    _
  // Predicated region
  $region22: #{intersect_concat_attention.1} parent=0 // pred_check
    _
  $region23: #{intersect_concat_attention.1} parent=0 // pred_check_branch
    %22 = sbr.rel (0) target = $region25
  $region24: #{intersect_concat_attention.1} parent=0 // pred_region
    _
  $region25: #{intersect_concat_attention.1} parent=0 // pred_fallthru
    _
  %v23 = vld [vmem:[%s0] sm:$0xff]
  %v24 = vld [vmem:[%s0 + $0x8] sm:$0xff]
  %v25 = vld [vmem:[%s0 + $0x10] sm:$0xff]
  %v26 = vld [vmem:[%s0 + $0x18] sm:$0xff]
  %v27 = vld [vmem:[%s3] sm:$0xff]
  %v28 = vld [vmem:[%s3 + $0x8] sm:$0xff]
  %v29 = vld [vmem:[%s3 + $0x10] sm:$0xff]
  %v30 = vld [vmem:[%s3 + $0x18] sm:$0xff]
  %v31 = vld [vmem:[%s1] sm:$0xff]
  %v32 = vld [vmem:[%s1 + $0x8] sm:$0xff]
  %v33 = vld [vmem:[%s1 + $0x10] sm:$0xff]
  %v34 = vld [vmem:[%s1 + $0x18] sm:$0xff]
  %v35 = vld [vmem:[%s1 + $0x20] sm:$0xff]
  %v36 = vld [vmem:[%s1 + $0x28] sm:$0xff]
  %v37 = vld [vmem:[%s1 + $0x30] sm:$0xff]
  %v38 = vld [vmem:[%s1 + $0x38] sm:$0xff]
  %v39 = vld [vmem:[%s4] sm:$0xff]
  %v40 = vld [vmem:[%s4 + $0x8] sm:$0xff]
  %v41 = vld [vmem:[%s4 + $0x10] sm:$0xff]
  %v42 = vld [vmem:[%s4 + $0x18] sm:$0xff]
  %v43 = vld [vmem:[%s4 + $0x20] sm:$0xff]
  %v44 = vld [vmem:[%s4 + $0x28] sm:$0xff]
  %v45 = vld [vmem:[%s4 + $0x30] sm:$0xff]
  %v46 = vld [vmem:[%s4 + $0x38] sm:$0xff]
  %v47 = vld [vmem:[%s4 + $0x40] sm:$0xff]
  %v48 = vld [vmem:[%s4 + $0x48] sm:$0xff]
  %v49 = vld [vmem:[%s4 + $0x50] sm:$0xff]
  %v50 = vld [vmem:[%s4 + $0x58] sm:$0xff]
  %v51 = vld [vmem:[%s4 + $0x60] sm:$0xff]
  %v52 = vld [vmem:[%s4 + $0x68] sm:$0xff]
  %v53 = vld [vmem:[%s4 + $0x70] sm:$0xff]
  %v54 = vld [vmem:[%s4 + $0x78] sm:$0xff]
  %v55 = vld [vmem:[%s4 + $0x80] sm:$0xff]
  %v56 = vld [vmem:[%s4 + $0x88] sm:$0xff]
  %v57 = vld [vmem:[%s4 + $0x90] sm:$0xff]
  %v58 = vld [vmem:[%s4 + $0x98] sm:$0xff]
  %v59 = vld [vmem:[%s4 + $0xa0] sm:$0xff]
  %v60 = vld [vmem:[%s4 + $0xa8] sm:$0xff]
  %v61 = vld [vmem:[%s4 + $0xb0] sm:$0xff]
  %v62 = vld [vmem:[%s4 + $0xb8] sm:$0xff]
  %v63 = vld [vmem:[%s4 + $0xc0] sm:$0xff]
  %v64 = vld [vmem:[%s4 + $0xc8] sm:$0xff]
  %v65 = vld [vmem:[%s4 + $0xd0] sm:$0xff]
  %v66 = vld [vmem:[%s4 + $0xd8] sm:$0xff]
  %v67 = vld [vmem:[%s4 + $0xe0] sm:$0xff]
  %v68 = vld [vmem:[%s4 + $0xe8] sm:$0xff]
  %v69 = vld [vmem:[%s4 + $0xf0] sm:$0xff]
  %v70 = vld [vmem:[%s4 + $0xf8] sm:$0xff]
  %71 = vmatprep.subr.mxu0 0.0
  %72 = vmatpush1.msra.mxu0 %v39
  %73 = vmatprep.subr.mxu0 0.0
  %74 = vmatpush1.msra.mxu0 %v40
  %75 = vmatprep.subr.mxu0 0.0
  %76 = vmatpush1.msra.mxu0 %v41
  %77 = vmatprep.subr.mxu0 0.0
  %78 = vmatpush1.msra.mxu0 %v42
  %79 = vmatprep.subr.mxu0 0.0
  %80 = vmatpush1.msra.mxu0 %v43
  %81 = vmatprep.subr.mxu0 0.0
  %82 = vmatpush1.msra.mxu0 %v44
  %83 = vmatprep.subr.mxu0 0.0
  %84 = vmatpush1.msra.mxu0 %v45
  %85 = vmatprep.subr.mxu0 0.0
  %86 = vmatpush1.msra.mxu0 %v46
  %87 = vmatprep.subr.mxu0 0.0
  %88 = vmatpush1.msra.mxu0 %v47
  %89 = vmatprep.subr.mxu0 0.0
  %90 = vmatpush1.msra.mxu0 %v48
  %91 = vmatprep.subr.mxu0 0.0
  %92 = vmatpush1.msra.mxu0 %v49
  %93 = vmatprep.subr.mxu0 0.0
  %94 = vmatpush1.msra.mxu0 %v50
  %95 = vmatprep.subr.mxu0 0.0
  %96 = vmatpush1.msra.mxu0 %v51
  %97 = vmatprep.subr.mxu0 0.0
  %98 = vmatpush1.msra.mxu0 %v52
  %99 = vmatprep.subr.mxu0 0.0
  %100 = vmatpush1.msra.mxu0 %v53
  %101 = vmatprep.subr.mxu0 0.0
  %102 = vmatpush1.msra.mxu0 %v54
  %103 = vmatprep.subr.mxu0 0.0
  %104 = vmatpush1.msra.mxu0 %v55
  %105 = vmatprep.subr.mxu0 0.0
  %106 = vmatpush1.msra.mxu0 %v56
  %107 = vmatprep.subr.mxu0 0.0
  %108 = vmatpush1.msra.mxu0 %v57
  %109 = vmatprep.subr.mxu0 0.0
  %110 = vmatpush1.msra.mxu0 %v58
  %111 = vmatprep.subr.mxu0 0.0
  %112 = vmatpush1.msra.mxu0 %v59
  %113 = vmatprep.subr.mxu0 0.0
  %114 = vmatpush1.msra.mxu0 %v60
  %115 = vmatprep.subr.mxu0 0.0
  %116 = vmatpush1.msra.mxu0 %v61
  %117 = vmatprep.subr.mxu0 0.0
  %118 = vmatpush1.msra.mxu0 %v62
  %119 = vmatprep.subr.mxu0 0.0
  %120 = vmatpush1.msra.mxu0 %v63
  %121 = vmatprep.subr.mxu0 0.0
  %122 = vmatpush1.msra.mxu0 %v64
  %123 = vmatprep.subr.mxu0 0.0
  %124 = vmatpush1.msra.mxu0 %v65
  %125 = vmatprep.subr.mxu0 0.0
  %126 = vmatpush1.msra.mxu0 %v66
  %127 = vmatprep.subr.mxu0 0.0
  %128 = vmatpush1.msra.mxu0 %v67
  %129 = vmatprep.subr.mxu0 0.0
  %130 = vmatpush1.msra.mxu0 %v68
  %131 = vmatprep.subr.mxu0 0.0
  %132 = vmatpush1.msra.mxu0 %v69
  %133 = vmatprep.subr.mxu0 0.0
  %134 = vmatpush1.msra.mxu0 %v70
  %135 = vmatprep.mubr.f32.mxu0 %v32
  %136 = vmatmul.mubr.f32.gmra.mrb[0].mxu0 %v31
  %v137 = vpop.f32.mrb[0].mxu0
  %v138 = vadd.f32 0.0, %v137
  %v139 = vpop.f32.mrb[0].mxu0
  %140 = vmatprep.mubr.f32.mxu0 %v34
  %141 = vmatmul.mubr.f32.gmra.mrb[0].mxu0 %v33
  %v142 = vpop.f32.mrb[0].mxu0
  %v143 = vadd.f32 0.0, %v142
  %v144 = vpop.f32.mrb[0].mxu0
  %145 = vmatprep.mubr.f32.mxu0 %v36
  %146 = vmatmul.mubr.f32.gmra.mrb[0].mxu0 %v35
  %v147 = vpop.f32.mrb[0].mxu0
  %v148 = vadd.f32 0.0, %v147
  %v149 = vpop.f32.mrb[0].mxu0
  %150 = vmatprep.mubr.f32.mxu0 %v38
  %151 = vmatmul.mubr.f32.gmra.mrb[0].mxu0 %v37
  %v152 = vpop.f32.mrb[0].mxu0
  %v153 = vadd.f32 0.0, %v152
  %v154 = vpop.f32.mrb[0].mxu0
  %155 = vdwg.mxu0
  %vm156 = vcmask 261120
  %v158 = vsel %vm156, %v23, 0
  %v161 = vsel %vm156, %v24, 0
  %v164 = vsel %vm156, %v25, 0
  %v167 = vsel %vm156, %v26, 0
  %169 = vmatprep.subr.mxu0 0.0
  %170 = vmatpush1.msra.mxu0 %v27
  %171 = vmatprep.subr.mxu0 0.0
  %172 = vmatpush1.msra.mxu0 %v28
  %173 = vmatprep.subr.mxu0 0.0
  %174 = vmatpush1.msra.mxu0 %v29
  %175 = vmatprep.subr.mxu0 0.0
  %176 = vmatpush1.msra.mxu0 %v30
  %177 = vmatprep.subr.mxu0 0.0
  %178 = vmatpush1.msra.mxu0 0.0
  %179 = vmatprep.subr.mxu0 0.0
  %180 = vmatpush1.msra.mxu0 0.0
  %181 = vmatprep.subr.mxu0 0.0
  %182 = vmatpush1.msra.mxu0 0.0
  %183 = vmatprep.subr.mxu0 0.0
  %184 = vmatpush1.msra.mxu0 0.0
  %185 = vmatprep.subr.mxu0 0.0
  %186 = vmatpush1.msra.mxu0 0.0
  %187 = vmatprep.subr.mxu0 0.0
  %188 = vmatpush1.msra.mxu0 0.0
  %189 = vmatprep.subr.mxu0 0.0
  %190 = vmatpush1.msra.mxu0 0.0
  %191 = vmatprep.subr.mxu0 0.0
  %192 = vmatpush1.msra.mxu0 0.0
  %193 = vmatprep.subr.mxu0 0.0
  %194 = vmatpush1.msra.mxu0 0.0
  %195 = vmatprep.subr.mxu0 0.0
  %196 = vmatpush1.msra.mxu0 0.0
  %197 = vmatprep.subr.mxu0 0.0
  %198 = vmatpush1.msra.mxu0 0.0
  %199 = vmatprep.subr.mxu0 0.0
  %200 = vmatpush1.msra.mxu0 0.0
  %201 = vmatprep.subr.mxu0 0.0
  %202 = vmatpush1.msra.mxu0 0.0
  %203 = vmatprep.subr.mxu0 0.0
  %204 = vmatpush1.msra.mxu0 0.0
  %205 = vmatprep.subr.mxu0 0.0
  %206 = vmatpush1.msra.mxu0 0.0
  %207 = vmatprep.subr.mxu0 0.0
  %208 = vmatpush1.msra.mxu0 0.0
  %209 = vmatprep.subr.mxu0 0.0
  %210 = vmatpush1.msra.mxu0 0.0
  %211 = vmatprep.subr.mxu0 0.0
  %212 = vmatpush1.msra.mxu0 0.0
  %213 = vmatprep.subr.mxu0 0.0
  %214 = vmatpush1.msra.mxu0 0.0
  %215 = vmatprep.subr.mxu0 0.0
  %216 = vmatpush1.msra.mxu0 0.0
  %217 = vmatprep.subr.mxu0 0.0
  %218 = vmatpush1.msra.mxu0 0.0
  %219 = vmatprep.subr.mxu0 0.0
  %220 = vmatpush1.msra.mxu0 0.0
  %221 = vmatprep.subr.mxu0 0.0
  %222 = vmatpush1.msra.mxu0 0.0
  %223 = vmatprep.subr.mxu0 0.0
  %224 = vmatpush1.msra.mxu0 0.0
  %225 = vmatprep.subr.mxu0 0.0
  %226 = vmatpush1.msra.mxu0 0.0
  %227 = vmatprep.subr.mxu0 0.0
  %228 = vmatpush1.msra.mxu0 0.0
  %229 = vmatprep.subr.mxu0 0.0
  %230 = vmatpush1.msra.mxu0 0.0
  %231 = vmatprep.subr.mxu0 0.0
  %232 = vmatpush1.msra.mxu0 0.0
  %233 = vmatprep.mubr.f32.mxu0 0.0
  %234 = vmatmul.mubr.f32.gmra.mrb[0].mxu0 %v158
  %v235 = vpop.f32.mrb[0].mxu0
  %v236 = vadd.f32 %v138, %v235
  %v237 = vpop.f32.mrb[0].mxu0
  %238 = vmatprep.mubr.f32.mxu0 0.0
  %239 = vmatmul.mubr.f32.gmra.mrb[0].mxu0 %v161
  %v240 = vpop.f32.mrb[0].mxu0
  %v241 = vadd.f32 %v143, %v240
  %v242 = vpop.f32.mrb[0].mxu0
  %243 = vmatprep.mubr.f32.mxu0 0.0
  %244 = vmatmul.mubr.f32.gmra.mrb[0].mxu0 %v164
  %v245 = vpop.f32.mrb[0].mxu0
  %v246 = vadd.f32 %v148, %v245
  %v247 = vpop.f32.mrb[0].mxu0
  %248 = vmatprep.mubr.f32.mxu0 0.0
  %249 = vmatmul.mubr.f32.gmra.mrb[0].mxu0 %v167
  %v250 = vpop.f32.mrb[0].mxu0
  %v251 = vadd.f32 %v153, %v250
  %v252 = vpop.f32.mrb[0].mxu0
  %253 = vdwg.mxu0
  %v254 = vld [vmem:[%s2] sm:$0xff]
  %v255 = vld [vmem:[%s2 + $0x8] sm:$0xff]
  %v256 = vld [vmem:[%s2 + $0x10] sm:$0xff]
  %v257 = vld [vmem:[%s2 + $0x18] sm:$0xff]
  %v258 = vld [vmem:[%s2 + $0x20] sm:$0xff]
  %v259 = vld [vmem:[%s2 + $0x28] sm:$0xff]
  %v260 = vld [vmem:[%s2 + $0x30] sm:$0xff]
  %v261 = vld [vmem:[%s2 + $0x38] sm:$0xff]
  %v262 = vld [vmem:[%s5] sm:$0xff]
  %v263 = vld [vmem:[%s5 + $0x8] sm:$0xff]
  %v264 = vld [vmem:[%s5 + $0x10] sm:$0xff]
  %v265 = vld [vmem:[%s5 + $0x18] sm:$0xff]
  %v266 = vld [vmem:[%s5 + $0x20] sm:$0xff]
  %v267 = vld [vmem:[%s5 + $0x28] sm:$0xff]
  %v268 = vld [vmem:[%s5 + $0x30] sm:$0xff]
  %v269 = vld [vmem:[%s5 + $0x38] sm:$0xff]
  %v270 = vld [vmem:[%s5 + $0x40] sm:$0xff]
  %v271 = vld [vmem:[%s5 + $0x48] sm:$0xff]
  %v272 = vld [vmem:[%s5 + $0x50] sm:$0xff]
  %v273 = vld [vmem:[%s5 + $0x58] sm:$0xff]
  %v274 = vld [vmem:[%s5 + $0x60] sm:$0xff]
  %v275 = vld [vmem:[%s5 + $0x68] sm:$0xff]
  %v276 = vld [vmem:[%s5 + $0x70] sm:$0xff]
  %v277 = vld [vmem:[%s5 + $0x78] sm:$0xff]
  %v278 = vld [vmem:[%s5 + $0x80] sm:$0xff]
  %v279 = vld [vmem:[%s5 + $0x88] sm:$0xff]
  %v280 = vld [vmem:[%s5 + $0x90] sm:$0xff]
  %v281 = vld [vmem:[%s5 + $0x98] sm:$0xff]
  %v282 = vld [vmem:[%s5 + $0xa0] sm:$0xff]
  %v283 = vld [vmem:[%s5 + $0xa8] sm:$0xff]
  %v284 = vld [vmem:[%s5 + $0xb0] sm:$0xff]
  %v285 = vld [vmem:[%s5 + $0xb8] sm:$0xff]
  %v286 = vld [vmem:[%s5 + $0xc0] sm:$0xff]
  %v287 = vld [vmem:[%s5 + $0xc8] sm:$0xff]
  %v288 = vld [vmem:[%s5 + $0xd0] sm:$0xff]
  %v289 = vld [vmem:[%s5 + $0xd8] sm:$0xff]
  %v290 = vld [vmem:[%s5 + $0xe0] sm:$0xff]
  %v291 = vld [vmem:[%s5 + $0xe8] sm:$0xff]
  %v292 = vld [vmem:[%s5 + $0xf0] sm:$0xff]
  %v293 = vld [vmem:[%s5 + $0xf8] sm:$0xff]
  %294 = vmatprep.subr.mxu0 0.0
  %295 = vmatpush1.msra.mxu0 %v262
  %296 = vmatprep.subr.mxu0 0.0
  %297 = vmatpush1.msra.mxu0 %v263
  %298 = vmatprep.subr.mxu0 0.0
  %299 = vmatpush1.msra.mxu0 %v264
  %300 = vmatprep.subr.mxu0 0.0
  %301 = vmatpush1.msra.mxu0 %v265
  %302 = vmatprep.subr.mxu0 0.0
  %303 = vmatpush1.msra.mxu0 %v266
  %304 = vmatprep.subr.mxu0 0.0
  %305 = vmatpush1.msra.mxu0 %v267
  %306 = vmatprep.subr.mxu0 0.0
  %307 = vmatpush1.msra.mxu0 %v268
  %308 = vmatprep.subr.mxu0 0.0
  %309 = vmatpush1.msra.mxu0 %v269
  %310 = vmatprep.subr.mxu0 0.0
  %311 = vmatpush1.msra.mxu0 %v270
  %312 = vmatprep.subr.mxu0 0.0
  %313 = vmatpush1.msra.mxu0 %v271
  %314 = vmatprep.subr.mxu0 0.0
  %315 = vmatpush1.msra.mxu0 %v272
  %316 = vmatprep.subr.mxu0 0.0
  %317 = vmatpush1.msra.mxu0 %v273
  %318 = vmatprep.subr.mxu0 0.0
  %319 = vmatpush1.msra.mxu0 %v274
  %320 = vmatprep.subr.mxu0 0.0
  %321 = vmatpush1.msra.mxu0 %v275
  %322 = vmatprep.subr.mxu0 0.0
  %323 = vmatpush1.msra.mxu0 %v276
  %324 = vmatprep.subr.mxu0 0.0
  %325 = vmatpush1.msra.mxu0 %v277
  %326 = vmatprep.subr.mxu0 0.0
  %327 = vmatpush1.msra.mxu0 %v278
  %328 = vmatprep.subr.mxu0 0.0
  %329 = vmatpush1.msra.mxu0 %v279
  %330 = vmatprep.subr.mxu0 0.0
  %331 = vmatpush1.msra.mxu0 %v280
  %332 = vmatprep.subr.mxu0 0.0
  %333 = vmatpush1.msra.mxu0 %v281
  %334 = vmatprep.subr.mxu0 0.0
  %335 = vmatpush1.msra.mxu0 %v282
  %336 = vmatprep.subr.mxu0 0.0
  %337 = vmatpush1.msra.mxu0 %v283
  %338 = vmatprep.subr.mxu0 0.0
  %339 = vmatpush1.msra.mxu0 %v284
  %340 = vmatprep.subr.mxu0 0.0
  %341 = vmatpush1.msra.mxu0 %v285
  %342 = vmatprep.subr.mxu0 0.0
  %343 = vmatpush1.msra.mxu0 %v286
  %344 = vmatprep.subr.mxu0 0.0
  %345 = vmatpush1.msra.mxu0 %v287
  %346 = vmatprep.subr.mxu0 0.0
  %347 = vmatpush1.msra.mxu0 %v288
  %348 = vmatprep.subr.mxu0 0.0
  %349 = vmatpush1.msra.mxu0 %v289
  %350 = vmatprep.subr.mxu0 0.0
  %351 = vmatpush1.msra.mxu0 %v290
  %352 = vmatprep.subr.mxu0 0.0
  %353 = vmatpush1.msra.mxu0 %v291
  %354 = vmatprep.subr.mxu0 0.0
  %355 = vmatpush1.msra.mxu0 %v292
  %356 = vmatprep.subr.mxu0 0.0
  %357 = vmatpush1.msra.mxu0 %v293
  %358 = vmatprep.mubr.f32.mxu0 %v255
  %359 = vmatmul.mubr.f32.gmra.mrb[0].mxu0 %v254
  %v360 = vpop.f32.mrb[0].mxu0
  %v361 = vadd.f32 0.0, %v360
  %v362 = vpop.f32.mrb[0].mxu0
  %363 = vmatprep.mubr.f32.mxu0 %v257
  %364 = vmatmul.mubr.f32.gmra.mrb[0].mxu0 %v256
  %v365 = vpop.f32.mrb[0].mxu0
  %v366 = vadd.f32 0.0, %v365
  %v367 = vpop.f32.mrb[0].mxu0
  %368 = vmatprep.mubr.f32.mxu0 %v259
  %369 = vmatmul.mubr.f32.gmra.mrb[0].mxu0 %v258
  %v370 = vpop.f32.mrb[0].mxu0
  %v371 = vadd.f32 0.0, %v370
  %v372 = vpop.f32.mrb[0].mxu0
  %373 = vmatprep.mubr.f32.mxu0 %v261
  %374 = vmatmul.mubr.f32.gmra.mrb[0].mxu0 %v260
  %v375 = vpop.f32.mrb[0].mxu0
  %v376 = vadd.f32 0.0, %v375
  %v377 = vpop.f32.mrb[0].mxu0
  %378 = vdwg.mxu0
  %v379 = vadd.f32 %v236, %v361
  %v380 = vadd.f32 %v241, %v366
  %v381 = vadd.f32 %v246, %v371
  %v382 = vadd.f32 %v251, %v376
  %vm383 = vcmp.ge.f32.partialorder %v379, 0.0
  %vm384 = vcmp.ge.f32.partialorder %v380, 0.0
  %vm385 = vcmp.ge.f32.partialorder %v381, 0.0
  %vm386 = vcmp.ge.f32.partialorder %v382, 0.0
  %v387 = vmul.f32 %v379, 0.2
  %v388 = vmul.f32 %v380, 0.2
  %v389 = vmul.f32 %v381, 0.2
  %v390 = vmul.f32 %v382, 0.2
  %v391 = vsel %vm383, %v379, %v387
  %v392 = vsel %vm384, %v380, %v388
  %v393 = vsel %vm385, %v381, %v389
  %v394 = vsel %vm386, %v382, %v390
  %v395 = vrot.slane %v391, 4
  %v396 = vmax.f32 %v391, %v395
  %v397 = vrot.slane %v396, 2
  %v398 = vmax.f32 %v396, %v397
  %v399 = vrot.slane %v398, 1
  %v400 = vmax.f32 %v398, %v399
  %v401 = vrot.slane %v392, 4
  %v402 = vmax.f32 %v392, %v401
  %v403 = vrot.slane %v402, 2
  %v404 = vmax.f32 %v402, %v403
  %v405 = vrot.slane %v404, 1
  %v406 = vmax.f32 %v404, %v405
  %v407 = vrot.slane %v393, 4
  %v408 = vmax.f32 %v393, %v407
  %v409 = vrot.slane %v408, 2
  %v410 = vmax.f32 %v408, %v409
  %v411 = vrot.slane %v410, 1
  %v412 = vmax.f32 %v410, %v411
  %v413 = vrot.slane %v394, 4
  %v414 = vmax.f32 %v394, %v413
  %v415 = vrot.slane %v414, 2
  %v416 = vmax.f32 %v414, %v415
  %v417 = vrot.slane %v416, 1
  %v418 = vmax.f32 %v416, %v417
  %v419 = vsub.f32 %v391, %v400
  %v420 = vsub.f32 %v392, %v406
  %v421 = vsub.f32 %v393, %v412
  %v422 = vsub.f32 %v394, %v418
  %v423 = vmul.f32 %v419, 1.442695
  %v424 = vpow.pop %v423
  %v425 = vmul.f32 %v420, 1.442695
  %v426 = vpow.pop %v425
  %v427 = vmul.f32 %v421, 1.442695
  %v428 = vpow.pop %v427
  %v429 = vmul.f32 %v422, 1.442695
  %v430 = vpow.pop %v429
  %v431 = vrot.slane %v424, 4
  %v432 = vadd.f32 %v424, %v431
  %v433 = vrot.slane %v432, 2
  %v434 = vadd.f32 %v432, %v433
  %v435 = vrot.slane %v434, 1
  %v436 = vadd.f32 %v434, %v435
  %v437 = vrot.slane %v426, 4
  %v438 = vadd.f32 %v426, %v437
  %v439 = vrot.slane %v438, 2
  %v440 = vadd.f32 %v438, %v439
  %v441 = vrot.slane %v440, 1
  %v442 = vadd.f32 %v440, %v441
  %v443 = vrot.slane %v428, 4
  %v444 = vadd.f32 %v428, %v443
  %v445 = vrot.slane %v444, 2
  %v446 = vadd.f32 %v444, %v445
  %v447 = vrot.slane %v446, 1
  %v448 = vadd.f32 %v446, %v447
  %v449 = vrot.slane %v430, 4
  %v450 = vadd.f32 %v430, %v449
  %v451 = vrot.slane %v450, 2
  %v452 = vadd.f32 %v450, %v451
  %v453 = vrot.slane %v452, 1
  %v454 = vadd.f32 %v452, %v453
  %v455 = vrcp.pop %v436
  %v456 = vrcp.pop %v442
  %v457 = vrcp.pop %v448
  %v458 = vrcp.pop %v454
  %v459 = vmul.f32 %v424, %v455
  %v460 = vmul.f32 %v426, %v456
  %v461 = vmul.f32 %v428, %v457
  %v462 = vmul.f32 %v430, %v458
  %v463 = vadd.f32 %v459, %v460
  %v464 = vadd.f32 %v463, %v461
  %v465 = vadd.f32 %v464, %v462
  %v466 = vld [vmem:[%s4] sm:$0xff]
  %v467 = vld [vmem:[%s4 + $0x8] sm:$0xff]
  %v468 = vld [vmem:[%s4 + $0x10] sm:$0xff]
  %v469 = vld [vmem:[%s4 + $0x18] sm:$0xff]
  %v470 = vlaneseq
  %v471 = vshrl.u32 %v470, 7
  %v472 = vsub.s32 0, %v471
  %v473 = vrot.slane %v465, %v472
  %v474 = vmul.f32 %v473, %v466
  %v475 = vmul.f32 %v473, %v467
  %v476 = vmul.f32 %v473, %v468
  %v477 = vmul.f32 %v473, %v469
  %v478 = vadd.f32 %v474, 0.0
  %v479 = vadd.f32 %v475, 0.0
  %v480 = vadd.f32 %v476, 0.0
  %v481 = vadd.f32 %v477, 0.0
  %v482 = vld [vmem:[%s4 + $0x20] sm:$0xff]
  %v483 = vld [vmem:[%s4 + $0x28] sm:$0xff]
  %v484 = vld [vmem:[%s4 + $0x30] sm:$0xff]
  %v485 = vld [vmem:[%s4 + $0x38] sm:$0xff]
  %v486 = vlaneseq
  %v487 = vshrl.u32 %v486, 7
  %v488 = vsub.s32 1, %v487
  %v489 = vrot.slane %v465, %v488
  %v490 = vmul.f32 %v489, %v482
  %v491 = vmul.f32 %v489, %v483
  %v492 = vmul.f32 %v489, %v484
  %v493 = vmul.f32 %v489, %v485
  %v494 = vadd.f32 %v478, %v490
  %v495 = vadd.f32 %v479, %v491
  %v496 = vadd.f32 %v480, %v492
  %v497 = vadd.f32 %v481, %v493
  %v498 = vld [vmem:[%s4 + $0x40] sm:$0xff]
  %v499 = vld [vmem:[%s4 + $0x48] sm:$0xff]
  %v500 = vld [vmem:[%s4 + $0x50] sm:$0xff]
  %v501 = vld [vmem:[%s4 + $0x58] sm:$0xff]
  %v502 = vlaneseq
  %v503 = vshrl.u32 %v502, 7
  %v504 = vsub.s32 2, %v503
  %v505 = vrot.slane %v465, %v504
  %v506 = vmul.f32 %v505, %v498
  %v507 = vmul.f32 %v505, %v499
  %v508 = vmul.f32 %v505, %v500
  %v509 = vmul.f32 %v505, %v501
  %v510 = vadd.f32 %v494, %v506
  %v511 = vadd.f32 %v495, %v507
  %v512 = vadd.f32 %v496, %v508
  %v513 = vadd.f32 %v497, %v509
  %v514 = vld [vmem:[%s4 + $0x60] sm:$0xff]
  %v515 = vld [vmem:[%s4 + $0x68] sm:$0xff]
  %v516 = vld [vmem:[%s4 + $0x70] sm:$0xff]
  %v517 = vld [vmem:[%s4 + $0x78] sm:$0xff]
  %v518 = vlaneseq
  %v519 = vshrl.u32 %v518, 7
  %v520 = vsub.s32 3, %v519
  %v521 = vrot.slane %v465, %v520
  %v522 = vmul.f32 %v521, %v514
  %v523 = vmul.f32 %v521, %v515
  %v524 = vmul.f32 %v521, %v516
  %v525 = vmul.f32 %v521, %v517
  %v526 = vadd.f32 %v510, %v522
  %v527 = vadd.f32 %v511, %v523
  %v528 = vadd.f32 %v512, %v524
  %v529 = vadd.f32 %v513, %v525
  %v530 = vld [vmem:[%s4 + $0x80] sm:$0xff]
  %v531 = vld [vmem:[%s4 + $0x88] sm:$0xff]
  %v532 = vld [vmem:[%s4 + $0x90] sm:$0xff]
  %v533 = vld [vmem:[%s4 + $0x98] sm:$0xff]
  %v534 = vlaneseq
  %v535 = vshrl.u32 %v534, 7
  %v536 = vsub.s32 4, %v535
  %v537 = vrot.slane %v465, %v536
  %v538 = vmul.f32 %v537, %v530
  %v539 = vmul.f32 %v537, %v531
  %v540 = vmul.f32 %v537, %v532
  %v541 = vmul.f32 %v537, %v533
  %v542 = vadd.f32 %v526, %v538
  %v543 = vadd.f32 %v527, %v539
  %v544 = vadd.f32 %v528, %v540
  %v545 = vadd.f32 %v529, %v541
  %v546 = vld [vmem:[%s4 + $0xa0] sm:$0xff]
  %v547 = vld [vmem:[%s4 + $0xa8] sm:$0xff]
  %v548 = vld [vmem:[%s4 + $0xb0] sm:$0xff]
  %v549 = vld [vmem:[%s4 + $0xb8] sm:$0xff]
  %v550 = vlaneseq
  %v551 = vshrl.u32 %v550, 7
  %v552 = vsub.s32 5, %v551
  %v553 = vrot.slane %v465, %v552
  %v554 = vmul.f32 %v553, %v546
  %v555 = vmul.f32 %v553, %v547
  %v556 = vmul.f32 %v553, %v548
  %v557 = vmul.f32 %v553, %v549
  %v558 = vadd.f32 %v542, %v554
  %v559 = vadd.f32 %v543, %v555
  %v560 = vadd.f32 %v544, %v556
  %v561 = vadd.f32 %v545, %v557
  %v562 = vld [vmem:[%s4 + $0xc0] sm:$0xff]
  %v563 = vld [vmem:[%s4 + $0xc8] sm:$0xff]
  %v564 = vld [vmem:[%s4 + $0xd0] sm:$0xff]
  %v565 = vld [vmem:[%s4 + $0xd8] sm:$0xff]
  %v566 = vlaneseq
  %v567 = vshrl.u32 %v566, 7
  %v568 = vsub.s32 6, %v567
  %v569 = vrot.slane %v465, %v568
  %v570 = vmul.f32 %v569, %v562
  %v571 = vmul.f32 %v569, %v563
  %v572 = vmul.f32 %v569, %v564
  %v573 = vmul.f32 %v569, %v565
  %v574 = vadd.f32 %v558, %v570
  %v575 = vadd.f32 %v559, %v571
  %v576 = vadd.f32 %v560, %v572
  %v577 = vadd.f32 %v561, %v573
  %v578 = vlaneseq
  %v579 = vshrl.u32 %v578, 7
  %v580 = vsub.s32 7, %v579
  %v581 = vrot.slane %v465, %v580
  %v582 = vmul.f32 %v581, %v67
  %v583 = vmul.f32 %v581, %v68
  %v584 = vmul.f32 %v581, %v69
  %v585 = vmul.f32 %v581, %v70
  %v586 = vadd.f32 %v574, %v582
  %v587 = vadd.f32 %v575, %v583
  %v588 = vadd.f32 %v576, %v584
  %v589 = vadd.f32 %v577, %v585
  %v590 = vmul.f32 %v586, 0.25
  %v591 = vmul.f32 %v587, 0.25
  %v592 = vmul.f32 %v588, 0.25
  %v593 = vmul.f32 %v589, 0.25
  %v594 = vxor.u32 %v590, 2147483648
  %v595 = vxor.u32 %v591, 2147483648
  %v596 = vxor.u32 %v592, 2147483648
  %v597 = vxor.u32 %v593, 2147483648
  %v598 = vmul.f32 %v594, 1.442695
  %v599 = vpow.pop %v598
  %v600 = vmul.f32 %v595, 1.442695
  %v601 = vpow.pop %v600
  %v602 = vmul.f32 %v596, 1.442695
  %v603 = vpow.pop %v602
  %v604 = vmul.f32 %v597, 1.442695
  %v605 = vpow.pop %v604
  %v606 = vadd.f32 %v599, 1.0
  %v607 = vadd.f32 %v601, 1.0
  %v608 = vadd.f32 %v603, 1.0
  %v609 = vadd.f32 %v605, 1.0
  %v610 = vrcp.pop %v606
  %v611 = vmul.f32 1.0, %v610
  %v612 = vrcp.pop %v607
  %v613 = vmul.f32 1.0, %v612
  %v614 = vrcp.pop %v608
  %v615 = vmul.f32 1.0, %v614
  %v616 = vrcp.pop %v609
  %v617 = vmul.f32 1.0, %v616
  %618 = vst [vmem:[%s6] sm:$0xff] %v611
  %619 = vst [vmem:[%s6 + $0x8] sm:$0xff] %v613
  %620 = vst [vmem:[%s6 + $0x10] sm:$0xff] %v615
  %621 = vst [vmem:[%s6 + $0x18] sm:$0xff] %v617
  // Predicated region
  $region26: #{intersect_concat_attention.1} parent=0 // pred_check
    _
  $region27: #{intersect_concat_attention.1} parent=0 // pred_check_branch
    %623 = sbr.rel (0) target = $region29
  $region28: #{intersect_concat_attention.1} parent=0 // pred_region
    _
  $region29: #{intersect_concat_attention.1} parent=0 // pred_fallthru
    _
  // Predicated region
  $region30: #{intersect_concat_attention.1} parent=0 // pred_check
    _
  $region31: #{intersect_concat_attention.1} parent=0 // pred_check_branch
    %625 = sbr.rel (0) target = $region33
  $region32: #{intersect_concat_attention.1} parent=0 // pred_region
    _
  $region33: #{intersect_concat_attention.1} parent=0 // pred_fallthru
    _

</llo_original>
